<compile_context>
chip_gen: v6e
topology: v6e:2x2x1
jax: 0.10.0
libtpu: 0.0.40
codegen_flags: <defaults>
</compile_context>

<pallas_src>
import functools

import jax
import jax.numpy as jnp
from jax.experimental import pallas as pl
from jax.experimental.pallas import tpu as pltpu


# ----------------------------- kernel ----------------------------------------

def _linear_hardsigmoid_kernel(x_ref, w_ref, o_ref):
    # y = z @ W^T  (bias=False)                                   -> MXU
    y = jnp.dot(x_ref[...], w_ref[...], preferred_element_type=jnp.float32)
    # PyTorch Hardsigmoid: clamp((y + 3) / 6, 0, 1)               -> VPU
    o_ref[...] = jnp.clip((y + 3.0) / 6.0, 0.0, 1.0).astype(o_ref.dtype)


# ----------------------------- wrapper ----------------------------------------

def linfe_decoder_forward(z, w_t, *, block_b=4096, out_dtype=None):
    """Forward pass of linFE_decoder: hardsigmoid(z @ w_t).

    z   : (B, z_dim)      float32
    w_t : (z_dim, in_dim) float32  (transpose of PyTorch's (in_dim, z_dim) weight)
    """
    B, Zd = z.shape
    Fout = w_t.shape[1]
    out_dtype = out_dtype if out_dtype is not None else z.dtype

    if B <= block_b:
        # Whole problem fits in one VMEM block on every TPU generation: single
        # fused call, no grid, nothing to pipeline.
        return pl.pallas_call(
            _linear_hardsigmoid_kernel,
            out_shape=jax.ShapeDtypeStruct((B, Fout), out_dtype),
        )(z, w_t)

    # Large-batch path: tile the batch with a parallel grid; the (small) weight
    # stays resident (index_map always returns block (0, 0)).
    grid_b = pl.cdiv(B, block_b)
    # Rebalance the tile so the batch splits into roughly even tiles (keeps
    # v7x's two TensorCores evenly loaded); keep it a multiple of 8 sublanes.
    block_b = ((pl.cdiv(B, grid_b) + 7) // 8) * 8
    grid_b = pl.cdiv(B, block_b)

    return pl.pallas_call(
        _linear_hardsigmoid_kernel,
        out_shape=jax.ShapeDtypeStruct((B, Fout), out_dtype),
        grid=(grid_b,),
        in_specs=[
            pl.BlockSpec((block_b, Zd), lambda i: (i, 0)),
            pl.BlockSpec((Zd, Fout), lambda i: (0, 0)),
        ],
        out_specs=pl.BlockSpec((block_b, Fout), lambda i: (i, 0)),
        compiler_params=pltpu.CompilerParams(
            dimension_semantics=("parallel",),
            # Headroom above v5e's 16 MiB scoped default; the (block_b, 8) z
            # tile is lane-padded 16x, so real usage at block_b=4096,
            # in_dim=128 is ~8-9 MiB double-buffered.
            vmem_limit_bytes=32 * 1024 * 1024,
        ),
    )(z, w_t)


# ----------------------------- parameter init --------------------------------

def init_decoder_params(key, z_dim, in_dim):
    """PyTorch-default-style init for Linear(z_dim, in_dim, bias=False).

    Weight stored already transposed as (z_dim, in_dim).
    """
    bound = 1.0 / jnp.sqrt(jnp.float32(z_dim))
    w_t = jax.random.uniform(key, (z_dim, in_dim), jnp.float32, -bound, bound)
    return {"w_t": w_t}


# ----------------------------- forward ---------------------------------------

@functools.partial(jax.jit, static_argnames=("block_b",))
def forward(z, w_t, block_b=4096):
    return linfe_decoder_forward(z, w_t, block_b=block_b)


def _reference(z, w_t):
    # Pure-JAX reference with PyTorch Hardsigmoid semantics.
    return jnp.clip((z @ w_t + 3.0) / 6.0, 0.0, 1.0)


# ----------------------------- main -------------------------------------------

if __name__ == "__main__":
    z_dim = 8
    in_dim = 128   # lane-dense output

    key = jax.random.PRNGKey(0)
    key, kz, kw, kz2 = jax.random.split(key, 4)
    params = init_decoder_params(kw, z_dim, in_dim)

    # ---- small-batch (single-block) path -------------------------------------
    batch = 16
    z = jax.random.normal(kz, (batch, z_dim), jnp.float32)
    out = jax.block_until_ready(forward(z, params["w_t"]))
    ref = _reference(z, params["w_t"])
    assert out.shape == (batch, in_dim), out.shape
    assert bool(jnp.all(jnp.isfinite(out)))
    assert bool(jnp.all((out >= 0.0) & (out <= 1.0)))          # hardsigmoid range
    assert bool(jnp.allclose(out, ref, atol=1e-6, rtol=1e-6))

    # ---- large-batch (tiled, parallel grid) path, non-divisible batch --------
    batch2 = 611                                               # exercises masked tail
    z2 = jax.random.normal(kz2, (batch2, z_dim), jnp.float32)
    out2 = jax.block_until_ready(forward(z2, params["w_t"], block_b=256))
    ref2 = _reference(z2, params["w_t"])
    assert out2.shape == (batch2, in_dim), out2.shape
    assert bool(jnp.all(jnp.isfinite(out2)))
    assert bool(jnp.all((out2 >= 0.0) & (out2 <= 1.0)))
    assert bool(jnp.allclose(out2, ref2, atol=1e-6, rtol=1e-6))

    print("KERNEL_OK")
</pallas_src>

<mosaic_0001>
module attributes {stable_mosaic.version = 11 : i64} {
  func.func @_linear_hardsigmoid_kernel(%arg0: memref<16x8xf32, #tpu.memory_space<vmem>>, %arg1: memref<8x128xf32, #tpu.memory_space<vmem>>, %arg2: memref<16x128xf32, #tpu.memory_space<vmem>>) attributes {dimension_semantics = [], scalar_prefetch = 0 : i64, scratch_operands = 0 : i64, tpu.core_type = #tpu.core_type<tc>} {
    %c0 = arith.constant 0 : index
    %c0_0 = arith.constant 0 : index
    %0 = vector.load %arg0[%c0, %c0_0] : memref<16x8xf32, #tpu.memory_space<vmem>>, vector<16x8xf32>
    %c0_1 = arith.constant 0 : index
    %c0_2 = arith.constant 0 : index
    %1 = vector.load %arg1[%c0_1, %c0_2] : memref<8x128xf32, #tpu.memory_space<vmem>>, vector<8x128xf32>
    %cst = arith.constant dense<0.000000e+00> : vector<16x128xf32>
    %2 = tpu.matmul %0, %1, %cst {dimension_numbers = #tpu.dot_dimension_numbers<[1], [0], [0], [1], [0, 0, 1, 1], [], []>} : vector<16x8xf32>, vector<8x128xf32>, vector<16x128xf32> -> vector<16x128xf32>
    %cst_3 = arith.constant 3.000000e+00 : f32
    %3 = vector.broadcast %cst_3 : f32 to vector<16x128xf32>
    %4 = arith.addf %2, %3 : vector<16x128xf32>
    %cst_4 = arith.constant 6.000000e+00 : f32
    %5 = vector.broadcast %cst_4 : f32 to vector<16x128xf32>
    %6 = arith.divf %4, %5 : vector<16x128xf32>
    %cst_5 = arith.constant 0.000000e+00 : f32
    %cst_6 = arith.constant 1.000000e+00 : f32
    %7 = vector.broadcast %cst_5 : f32 to vector<16x128xf32>
    %8 = arith.maximumf %7, %6 : vector<16x128xf32>
    %9 = vector.broadcast %cst_6 : f32 to vector<16x128xf32>
    %10 = arith.minimumf %9, %8 : vector<16x128xf32>
    %c0_7 = arith.constant 0 : index
    %c0_8 = arith.constant 0 : index
    %11 = vector.load %arg2[%c0_7, %c0_8] : memref<16x128xf32, #tpu.memory_space<vmem>>, vector<16x128xf32>
    tpu.vector_store %arg2[%c0_7, %c0_8], %10 {strides = array<i32>} : memref<16x128xf32, #tpu.memory_space<vmem>>, vector<16x128xf32>,
    return
  }
}

</mosaic_0001>

<llo_original>
// kernel: forward.1
$region0: #{forward.1}
  #allocation0 [shape = 'u32[]', space=smem, size = 0x4, offset = 0x4, fixed_abs, tag = 'smem constant byte address 0x4 - core index']
  #allocation1 [shape = 'u32[144,128]{1,0:T(1,128)}', space=vmem, size = 0x12000, scoped, tag = 'internal scratch']
  %s0 = inlined_call_operand.vmem [shape: f32[16,8], index: 0, kind: input, shape index: {}]
  %s1 = inlined_call_operand.vmem [shape: f32[8,128], index: 1, kind: input, shape index: {}]
  %s2 = inlined_call_operand.hbm [shape: f32[16,128], index: 2, kind: output, shape index: {}]
  %s3 = sld [smem:[#allocation0]]
  $region18: #{forward.1} parent=0
    _
  %s5 = ssub.s32 1, %s3
  %s6 = scalar_select 0, %s5, %s3
  $region1: #{forward.1} parent=0
    #allocation2 [shape = 'u8[8192]{0}', space=vmem, size = 0x2000, scoped, tag = 'output window, operand 0, single buffered']
    #allocation3 [shape = 's32[1]{0}', space=sflag, size = 0x4, scoped, tag = 'scoped memory for forward.1']
    %7 = vsyncpa [#allocation3], 0
    // Predicated region
    $region2: #{forward.1} parent=1 // pred_check
      _
    $region3: #{forward.1} parent=1 // pred_check_branch
      %9 = sbr.rel (0) target = $region5
    $region4: #{forward.1} parent=1 // pred_region
      _
    $region5: #{forward.1} parent=1 // pred_fallthru
      _
    // Predicated region
    $region6: #{forward.1} parent=1 // pred_check
      _
    $region7: #{forward.1} parent=1 // pred_check_branch
      %11 = sbr.rel (0) target = $region9
    $region8: #{forward.1} parent=1 // pred_region
      _
    $region9: #{forward.1} parent=1 // pred_fallthru
      _
    %v12 = vld [vmem:[%s0] sm:$0xff]
    %v13 = vld [vmem:[%s0 + $0x8] sm:$0xff]
    %v14 = vld [vmem:[%s1] sm:$0xff]
    %vm15 = vcmask 64512
    %v17 = vsel %vm15, %v12, 0
    %v20 = vsel %vm15, %v13, 0
    %22 = vmatprep.subr.mxu0 0.0
    %23 = vmatpush1.msra.mxu0 0.0
    %24 = vmatprep.subr.mxu0 0.0
    %25 = vmatpush1.msra.mxu0 0.0
    %26 = vmatprep.subr.mxu0 0.0
    %27 = vmatpush1.msra.mxu0 0.0
    %28 = vmatprep.subr.mxu0 0.0
    %29 = vmatpush1.msra.mxu0 0.0
    %30 = vmatprep.subr.mxu0 0.0
    %31 = vmatpush1.msra.mxu0 0.0
    %32 = vmatprep.subr.mxu0 0.0
    %33 = vmatpush1.msra.mxu0 0.0
    %34 = vmatprep.subr.mxu0 0.0
    %35 = vmatpush1.msra.mxu0 0.0
    %36 = vmatprep.subr.mxu0 0.0
    %37 = vmatpush1.msra.mxu0 0.0
    %38 = vmatprep.subr.mxu0 0.0
    %39 = vmatpush1.msra.mxu0 0.0
    %40 = vmatprep.subr.mxu0 0.0
    %41 = vmatpush1.msra.mxu0 0.0
    %42 = vmatprep.subr.mxu0 0.0
    %43 = vmatpush1.msra.mxu0 0.0
    %44 = vmatprep.subr.mxu0 0.0
    %45 = vmatpush1.msra.mxu0 0.0
    %46 = vmatprep.subr.mxu0 0.0
    %47 = vmatpush1.msra.mxu0 0.0
    %48 = vmatprep.subr.mxu0 0.0
    %49 = vmatpush1.msra.mxu0 0.0
    %50 = vmatprep.subr.mxu0 0.0
    %51 = vmatpush1.msra.mxu0 0.0
    %52 = vmatprep.subr.mxu0 0.0
    %53 = vmatpush1.msra.mxu0 %v14
    %54 = vmatprep.subr.mxu0 0.0
    %55 = vmatpush2.msra.mxu0 0.0
    %56 = vmatprep.subr.mxu0 0.0
    %57 = vmatpush2.msra.mxu0 0.0
    %58 = vmatprep.subr.mxu0 0.0
    %59 = vmatpush2.msra.mxu0 0.0
    %60 = vmatprep.subr.mxu0 0.0
    %61 = vmatpush2.msra.mxu0 0.0
    %62 = vmatprep.subr.mxu0 0.0
    %63 = vmatpush2.msra.mxu0 0.0
    %64 = vmatprep.subr.mxu0 0.0
    %65 = vmatpush2.msra.mxu0 0.0
    %66 = vmatprep.subr.mxu0 0.0
    %67 = vmatpush2.msra.mxu0 0.0
    %68 = vmatprep.subr.mxu0 0.0
    %69 = vmatpush2.msra.mxu0 0.0
    %70 = vmatprep.subr.mxu0 0.0
    %71 = vmatpush2.msra.mxu0 0.0
    %72 = vmatprep.subr.mxu0 0.0
    %73 = vmatpush2.msra.mxu0 0.0
    %74 = vmatprep.subr.mxu0 0.0
    %75 = vmatpush2.msra.mxu0 0.0
    %76 = vmatprep.subr.mxu0 0.0
    %77 = vmatpush2.msra.mxu0 0.0
    %78 = vmatprep.subr.mxu0 0.0
    %79 = vmatpush2.msra.mxu0 0.0
    %80 = vmatprep.subr.mxu0 0.0
    %81 = vmatpush2.msra.mxu0 0.0
    %82 = vmatprep.subr.mxu0 0.0
    %83 = vmatpush2.msra.mxu0 0.0
    %84 = vmatprep.subr.mxu0 0.0
    %85 = vmatpush2.msra.mxu0 0.0
    %86 = vmatprep.mubr.f32.mxu0 0.0
    %87 = vmatmul.mubr.f32.gmra.mxu0 %v17
    %v88 = vpop.f32.mrf.mxu0
    %v89 = vadd.f32 3.0, %v88
    %v90 = vpop.f32.mrf.mxu0
    %91 = vmatprep.mubr.f32.mxu0 0.0
    %92 = vmatmul.mubr.f32.gmra.mxu0 %v20
    %v93 = vpop.f32.mrf.mxu0
    %v94 = vadd.f32 3.0, %v93
    %v95 = vpop.f32.mrf.mxu0
    %96 = vdwg.mxu0
    %v97 = vrcp.pop 6.0
    %v98 = vmul.f32 %v89, %v97
    %v99 = vmul.f32 %v94, %v97
    %v100 = vmax.f32 %v98, 0.0
    %v101 = vmax.f32 %v99, 0.0
    %v102 = vmin.f32 %v100, 1.0
    %v103 = vmin.f32 %v101, 1.0
    %104 = vst [vmem:[#allocation2] sm:$0xff] %v102
    %105 = vst [vmem:[#allocation2 + $0x8] sm:$0xff] %v103
    // Predicated region
    $region10: #{forward.1} parent=1 // pred_check
      _
    $region11: #{forward.1} parent=1 // pred_check_branch
      %107 = sbr.rel (0) target = $region13
    $region12: #{forward.1} parent=1 // pred_region
      %s109 = ssub.s32 256, 256
      %110 = vsyncadd [#allocation3], %s109
      %s111 = sshll.u32 [#allocation2], 4
      %s112 = int_to_ptr.vmem [resolvable:$true] %s111
      %117 = dma.vmem_to_hbm [thread:$0]  %s112, 256, %s2, [#allocation3], 128, 128, 8
    $region13: #{forward.1} parent=1 // pred_fallthru
      _
    // Predicated region
    $region14: #{forward.1} parent=1 // pred_check
      _
    $region15: #{forward.1} parent=1 // pred_check_branch
      %119 = sbr.rel (0) target = $region17
    $region16: #{forward.1} parent=1 // pred_region
      %120 = dma.done [#allocation3], 256
    $region17: #{forward.1} parent=1 // pred_fallthru
      _
    %121 = vsyncpa [#allocation3], 1

</llo_original>
